<compile_context>
chip_gen: v6e
topology: v6e:2x2x1
jax: 0.10.0
libtpu: 0.0.40
codegen_flags: <defaults>
</compile_context>

<pallas_src>
import functools
import math

import jax
import jax.numpy as jnp
from jax.experimental import pallas as pl
from jax.experimental.pallas import tpu as pltpu


def _round_up(x, m):
    return (x + m - 1) // m * m


def _fc_kernel_single_k(x_ref, w_ref, b_ref, o_ref, *, use_relu):
    # Whole contraction dim resident in VMEM: no accumulator, no K grid axis.
    x = x_ref[...].astype(jnp.bfloat16)
    y = jnp.dot(x, w_ref[...], preferred_element_type=jnp.float32)
    y = y + b_ref[...]
    if use_relu:
        y = jnp.maximum(y, 0.0)
    o_ref[...] = y.astype(o_ref.dtype)


def _fc_kernel_multi_k(x_ref, w_ref, b_ref, o_ref, acc_ref, *, use_relu, k_size, tk):
    k = pl.program_id(2)

    @pl.when(k == 0)
    def _():
        # Bias-initialize the accumulator: no separate bias add in the epilogue.
        acc_ref[...] = jnp.broadcast_to(b_ref[...], acc_ref.shape).astype(jnp.float32)

    x = x_ref[...].astype(jnp.bfloat16)
    w = w_ref[...]
    if k_size % tk != 0:
        # Ragged K edge: zero the out-of-range slice on BOTH operands so garbage
        # (possibly NaN) never reaches the MXU accumulation of valid outputs.
        limit = k_size - k * tk
        col = jax.lax.broadcasted_iota(jnp.int32, x.shape, 1)
        row = jax.lax.broadcasted_iota(jnp.int32, w.shape, 0)
        x = jnp.where(col < limit, x, 0).astype(jnp.bfloat16)
        w = jnp.where(row < limit, w, 0).astype(w_ref.dtype)

    acc_ref[...] += jnp.dot(x, w, preferred_element_type=jnp.float32)

    @pl.when(k == pl.num_programs(2) - 1)
    def _():
        y = acc_ref[...]
        if use_relu:
            y = jnp.maximum(y, 0.0)
        o_ref[...] = y.astype(o_ref.dtype)


def fc_prepare_params(w, b, compute_dtype=jnp.bfloat16):
    """One-time parameter prep (call at module init, NOT per forward call).

    PyTorch nn.Linear stores W as (out, in); the kernel contracts a (K, N) bf16 RHS.
    """
    wt = jnp.asarray(w).T.astype(compute_dtype)            # (K, N)
    b2 = jnp.asarray(b, jnp.float32).reshape(1, -1)         # (1, N), f32 for exact bias add
    return wt, b2


def fc_forward(x, wt, b2, *, use_relu=True, dropout_rate=0.0, training=False,
               out_dtype=None, tm=512, tn=512, tk_max=2048):
    """FC.forward.  x: (..., K), wt: (K, N) bf16 (pre-transposed), b2: (1, N) f32."""
    if dropout_rate > 0.0 and training:
        # TODO(synk): training-mode dropout (pltpu.prng_seed + prng_random_bits mask in
        # the epilogue) not implemented; eval-mode dropout is the identity.
        raise NotImplementedError("training-mode dropout not implemented")

    K, N = wt.shape
    if x.shape[-1] != K:
        raise ValueError(f"x last dim {x.shape[-1]} != in_features {K}")
    lead = x.shape[:-1]
    M = math.prod(lead) if lead else 1
    x2 = x.reshape(M, K)
    out_dtype = jnp.dtype(out_dtype) if out_dtype is not None else x.dtype

    # Tile sizes: full extent for small dims, sublane/lane aligned otherwise.
    tm = min(tm, _round_up(M, 8))
    tn = min(tn, _round_up(N, 128))
    grid_m = pl.cdiv(M, tm)
    grid_n = pl.cdiv(N, tn)

    # Pre-cast x only when its tiles are re-streamed across several N blocks;
    # otherwise the wrapper cast would be a wasted extra HBM pass.
    if grid_n > 1 and x2.dtype != wt.dtype:
        x2 = x2.astype(wt.dtype)

    cost = pl.CostEstimate(
        flops=2 * M * N * K,
        bytes_accessed=int(x2.size * x2.dtype.itemsize * grid_n
                           + wt.size * wt.dtype.itemsize * grid_m
                           + b2.size * b2.dtype.itemsize
                           + M * N * out_dtype.itemsize),
        transcendentals=0,
    )

    if K <= tk_max:
        # ---- single K block: no accumulator, no K grid axis -------------------
        grid = (grid_m, grid_n)
        kernel = functools.partial(_fc_kernel_single_k, use_relu=use_relu)
        in_specs = [
            pl.BlockSpec((tm, K), lambda i, j: (i, 0)),
            pl.BlockSpec((K, tn), lambda i, j: (0, j)),
            pl.BlockSpec((1, tn), lambda i, j: (0, j)),
        ]
        out_specs = pl.BlockSpec((tm, tn), lambda i, j: (i, j))
        scratch_shapes = []
        dim_sem = ("parallel", "parallel")
    else:
        # ---- multi K blocks: resident f32 accumulator, K innermost ------------
        tk = tk_max  # multiple of 128
        grid_k = pl.cdiv(K, tk)
        grid = (grid_m, grid_n, grid_k)
        kernel = functools.partial(_fc_kernel_multi_k, use_relu=use_relu,
                                   k_size=K, tk=tk)
        in_specs = [
            pl.BlockSpec((tm, tk), lambda i, j, k: (i, k)),
            pl.BlockSpec((tk, tn), lambda i, j, k: (k, j)),
            pl.BlockSpec((1, tn), lambda i, j, k: (0, j)),
        ]
        out_specs = pl.BlockSpec((tm, tn), lambda i, j, k: (i, j))
        scratch_shapes = [pltpu.VMEM((tm, tn), jnp.float32)]
        dim_sem = ("parallel", "parallel", "arbitrary")

    out = pl.pallas_call(
        kernel,
        out_shape=jax.ShapeDtypeStruct((M, N), out_dtype),
        grid_spec=pltpu.PrefetchScalarGridSpec(
            num_scalar_prefetch=0,
            grid=grid,
            in_specs=in_specs,
            out_specs=out_specs,
            scratch_shapes=scratch_shapes,
        ),
        compiler_params=pltpu.CompilerParams(dimension_semantics=dim_sem),
        cost_estimate=cost,
    )(x2, wt, b2)

    return out.reshape(*lead, N)


if __name__ == "__main__":
    key = jax.random.PRNGKey(0)
    kx, kw, kb = jax.random.split(key, 3)

    # Small shapes implied by the module: token matrix (batch=2, seq=8, in=32) -> out=128.
    B, S, IN, OUT = 2, 8, 32, 128
    x = jax.random.normal(kx, (B, S, IN), dtype=jnp.float32)
    w = (0.05 * jax.random.normal(kw, (OUT, IN))).astype(jnp.float32)
    b = (0.05 * jax.random.normal(kb, (OUT,))).astype(jnp.float32)

    # One-time prep (module init), then a jitted forward.
    wt, b2 = fc_prepare_params(w, b)
    fc = jax.jit(functools.partial(fc_forward, use_relu=True, dropout_rate=0.0))

    y = jax.block_until_ready(fc(x, wt, b2))
    assert y.shape == (B, S, OUT), y.shape
    assert y.dtype == x.dtype, y.dtype

    # Reference 1: exact same bf16-quantized operands, f32 math -> tight tolerance.
    xq = x.astype(jnp.bfloat16).astype(jnp.float32)
    wq = w.astype(jnp.bfloat16).astype(jnp.float32)
    ref_q = jnp.maximum(xq.reshape(-1, IN) @ wq.T + b, 0.0).reshape(B, S, OUT)
    err_q = float(jnp.max(jnp.abs(y - ref_q)))
    assert jnp.allclose(y, ref_q, rtol=1e-2, atol=1e-2), err_q

    # Reference 2: full-precision f32 FC -> verifies bf16 compression stays in tolerance.
    ref = jnp.maximum(x.reshape(-1, IN) @ w.T + b, 0.0).reshape(B, S, OUT)
    err = float(jnp.max(jnp.abs(y - ref)))
    assert jnp.allclose(y, ref, rtol=2e-2, atol=2e-2), err

    # Also exercise the multi-K (accumulator) path once with a larger, ragged K.
    K2, N2, M2 = 2304, 256, 64
    kx2, kw2, kb2 = jax.random.split(jax.random.PRNGKey(1), 3)
    x_big = jax.random.normal(kx2, (M2, K2), dtype=jnp.float32)
    w_big = (0.02 * jax.random.normal(kw2, (N2, K2))).astype(jnp.float32)
    b_big = (0.02 * jax.random.normal(kb2, (N2,))).astype(jnp.float32)
    wt_big, b2_big = fc_prepare_params(w_big, b_big)
    y_big = jax.block_until_ready(
        fc_forward(x_big, wt_big, b2_big, use_relu=True, tk_max=1024))
    ref_big = jnp.maximum(
        x_big.astype(jnp.bfloat16).astype(jnp.float32)
        @ w_big.astype(jnp.bfloat16).astype(jnp.float32).T + b_big, 0.0)
    assert jnp.allclose(y_big, ref_big, rtol=2e-2, atol=2e-2), \
        float(jnp.max(jnp.abs(y_big - ref_big)))

    print("KERNEL_OK")
</pallas_src>

<mosaic_0001>
module attributes {stable_mosaic.version = 11 : i64} {
  func.func @_fc_kernel_single_k(%arg0: i32, %arg1: i32, %arg2: memref<16x32xf32, #tpu.memory_space<vmem>>, %arg3: memref<32x128xbf16, #tpu.memory_space<vmem>>, %arg4: memref<1x128xf32, #tpu.memory_space<vmem>>, %arg5: memref<16x128xf32, #tpu.memory_space<vmem>>) attributes {dimension_semantics = [#tpu.dimension_semantics<parallel>, #tpu.dimension_semantics<parallel>], iteration_bounds = array<i64: 1, 1>, scalar_prefetch = 0 : i64, scratch_operands = 0 : i64, tpu.core_type = #tpu.core_type<tc>, window_params = [{transform_indices = @transform_0, window_bounds = array<i64: 16, 32>}, {transform_indices = @transform_1, window_bounds = array<i64: 32, 128>}, {transform_indices = @transform_2, window_bounds = array<i64: 1, 128>}, {transform_indices = @transform_3, window_bounds = array<i64: 16, 128>}]} {
    %c0 = arith.constant 0 : index
    %c0_0 = arith.constant 0 : index
    %0 = vector.load %arg2[%c0, %c0_0] : memref<16x32xf32, #tpu.memory_space<vmem>>, vector<16x32xf32>
    %1 = arith.truncf %0 : vector<16x32xf32> to vector<16x32xbf16>
    %c0_1 = arith.constant 0 : index
    %c0_2 = arith.constant 0 : index
    %2 = vector.load %arg3[%c0_1, %c0_2] : memref<32x128xbf16, #tpu.memory_space<vmem>>, vector<32x128xbf16>
    %cst = arith.constant dense<0.000000e+00> : vector<16x128xf32>
    %3 = tpu.matmul %1, %2, %cst {dimension_numbers = #tpu.dot_dimension_numbers<[1], [0], [0], [1], [0, 0, 1, 1], [], []>} : vector<16x32xbf16>, vector<32x128xbf16>, vector<16x128xf32> -> vector<16x128xf32>
    %c0_3 = arith.constant 0 : index
    %c0_4 = arith.constant 0 : index
    %4 = vector.load %arg4[%c0_3, %c0_4] : memref<1x128xf32, #tpu.memory_space<vmem>>, vector<1x128xf32>
    %5 = vector.broadcast %4 : vector<1x128xf32> to vector<16x128xf32>
    %6 = arith.addf %3, %5 : vector<16x128xf32>
    %cst_5 = arith.constant 0.000000e+00 : f32
    %7 = vector.broadcast %cst_5 : f32 to vector<16x128xf32>
    %8 = arith.maximumf %6, %7 : vector<16x128xf32>
    %c0_6 = arith.constant 0 : index
    %c0_7 = arith.constant 0 : index
    %9 = vector.load %arg5[%c0_6, %c0_7] : memref<16x128xf32, #tpu.memory_space<vmem>>, vector<16x128xf32>
    tpu.vector_store %arg5[%c0_6, %c0_7], %8 {strides = array<i32>} : memref<16x128xf32, #tpu.memory_space<vmem>>, vector<16x128xf32>,
    return
  }
  func.func @transform_0(%arg0: i32, %arg1: i32) -> (i32, i32) {
    %c0_i32 = arith.constant 0 : i32
    %c0_i32_0 = arith.constant 0 : i32
    return %arg0, %c0_i32 : i32, i32
  }
  func.func @transform_1(%arg0: i32, %arg1: i32) -> (i32, i32) {
    %c0_i32 = arith.constant 0 : i32
    %c0_i32_0 = arith.constant 0 : i32
    return %c0_i32, %arg1 : i32, i32
  }
  func.func @transform_2(%arg0: i32, %arg1: i32) -> (i32, i32) {
    %c0_i32 = arith.constant 0 : i32
    %c0_i32_0 = arith.constant 0 : i32
    return %c0_i32, %arg1 : i32, i32
  }
  func.func @transform_3(%arg0: i32, %arg1: i32) -> (i32, i32) {
    %c0_i32 = arith.constant 0 : i32
    return %arg0, %arg1 : i32, i32
  }
}

</mosaic_0001>

<llo_original>
// kernel: fc_forward.1
$region0: #{fc_forward.1}
  #allocation0 [shape = 'u32[]', space=smem, size = 0x4, offset = 0x4, fixed_abs, tag = 'smem constant byte address 0x4 - core index']
  #allocation1 [shape = 'u32[144,128]{1,0:T(1,128)}', space=vmem, size = 0x12000, scoped, tag = 'internal scratch']
  %s0 = inlined_call_operand.hbm [shape: f32[16,32], index: 0, kind: input, shape index: {}]
  %s1 = inlined_call_operand.hbm [shape: bf16[32,128], index: 1, kind: input, shape index: {}]
  %s2 = inlined_call_operand.vmem [shape: f32[1,128], index: 2, kind: input, shape index: {}]
  %s3 = inlined_call_operand.hbm [shape: f32[16,128], index: 3, kind: output, shape index: {}]
  %s4 = sld [smem:[#allocation0]]
  $region30: #{fc_forward.1} parent=0
    _
  %s6 = ssub.s32 1, %s4
  %s7 = scalar_select 0, %s6, %s4
  $region1: #{fc_forward.1} parent=0
    #allocation2 [shape = 'u8[8192]{0}', space=vmem, size = 0x2000, scoped, tag = 'input window, operand 0, single buffered']
    #allocation3 [shape = 's32[1]{0}', space=sflag, size = 0x4, scoped, tag = 'scoped memory for fc_forward.1']
    #allocation4 [shape = 's32[1]{0}', space=sflag, size = 0x4, scoped, tag = 'scoped memory for fc_forward.1']
    #allocation5 [shape = 'u8[8192]{0}', space=vmem, size = 0x2000, scoped, tag = 'input window, operand 1, single buffered']
    #allocation6 [shape = 's32[1]{0}', space=sflag, size = 0x4, scoped, tag = 'scoped memory for fc_forward.1']
    #allocation7 [shape = 'u8[8192]{0}', space=vmem, size = 0x2000, scoped, tag = 'output window, operand 0, single buffered']
    %8 = vsyncpa [#allocation3], 0
    %9 = vsyncpa [#allocation6], 0
    %10 = vsyncpa [#allocation4], 0
    // Predicated region
    $region2: #{fc_forward.1} parent=1 // pred_check
      _
    $region3: #{fc_forward.1} parent=1 // pred_check_branch
      %12 = sbr.rel (0) target = $region5
    $region4: #{fc_forward.1} parent=1 // pred_region
      %s14 = ssub.s32 256, 256
      %15 = vsyncadd [#allocation3], %s14
      %s16 = sshll.u32 [#allocation2], 4
      %s17 = int_to_ptr.vmem [resolvable:$true] %s16
      %22 = dma.hbm_to_vmem [thread:$0]  %s0, 256, %s17, [#allocation3], 128, 128, 8
    $region5: #{fc_forward.1} parent=1 // pred_fallthru
      _
    // Predicated region
    $region6: #{fc_forward.1} parent=1 // pred_check
      _
    $region7: #{fc_forward.1} parent=1 // pred_check_branch
      %24 = sbr.rel (0) target = $region9
    $region8: #{fc_forward.1} parent=1 // pred_region
      %s26 = ssub.s32 256, 256
      %27 = vsyncadd [#allocation6], %s26
      %s28 = sshll.u32 [#allocation5], 4
      %s29 = int_to_ptr.vmem [resolvable:$true] %s28
      %34 = dma.hbm_to_vmem [thread:$0]  %s1, 256, %s29, [#allocation6], 64, 64, 4
    $region9: #{fc_forward.1} parent=1 // pred_fallthru
      _
    // Predicated region
    $region10: #{fc_forward.1} parent=1 // pred_check
      _
    $region11: #{fc_forward.1} parent=1 // pred_check_branch
      %36 = sbr.rel (0) target = $region13
    $region12: #{fc_forward.1} parent=1 // pred_region
      _
    $region13: #{fc_forward.1} parent=1 // pred_fallthru
      _
    // Predicated region
    $region14: #{fc_forward.1} parent=1 // pred_check
      _
    $region15: #{fc_forward.1} parent=1 // pred_check_branch
      %38 = sbr.rel (0) target = $region17
    $region16: #{fc_forward.1} parent=1 // pred_region
      %39 = dma.done [#allocation3], 256
    $region17: #{fc_forward.1} parent=1 // pred_fallthru
      _
    // Predicated region
    $region18: #{fc_forward.1} parent=1 // pred_check
      _
    $region19: #{fc_forward.1} parent=1 // pred_check_branch
      %41 = sbr.rel (0) target = $region21
    $region20: #{fc_forward.1} parent=1 // pred_region
      %42 = dma.done [#allocation6], 256
    $region21: #{fc_forward.1} parent=1 // pred_fallthru
      _
    %v44 = vld [vmem:[#allocation2] sm:$0xff]
    %v45 = vld [vmem:[#allocation2 + $0x8] sm:$0xff]
    %v46 = vpack.c.bf16 %v45, %v44
    %v47 = vld [vmem:[#allocation5] sm:$0xf]
    %v48 = vld [vmem:[#allocation5 + $0x4] sm:$0xf]
    %v49 = vld [vmem:[#allocation5 + $0x8] sm:$0xf]
    %v50 = vld [vmem:[#allocation5 + $0xc] sm:$0xf]
    %v51 = vld [vmem:[%s2] sm:$0x1]
    %v53 = vlaneseq
    %v54 = vshrl.u32 %v53, 7
    %v55 = vsub.s32 0, %v54
    %v56 = vrot.slane %v51, %v55
    %v62 = vunpack.c.l.b16 %v47
    %v63 = vunpack.c.l.b16 %v48
    %v64 = vunpack.c.l.b16 %v49
    %v65 = vunpack.c.l.b16 %v50
    %v66 = vpack.c.b16 %v63, %v62
    %v67 = vpack.c.b16 %v65, %v64
    %vm70 = vcmask 261120
    %v72 = vsel %vm70, %v46, 0
    %74 = vmatprep.subr.bf16.mxu0 0
    %75 = vmatpush1.bf16.msra.mxu0 0
    %76 = vmatprep.subr.bf16.mxu0 0
    %77 = vmatpush1.bf16.msra.mxu0 0
    %78 = vmatprep.subr.bf16.mxu0 0
    %79 = vmatpush1.bf16.msra.mxu0 0
    %80 = vmatprep.subr.bf16.mxu0 0
    %81 = vmatpush1.bf16.msra.mxu0 0
    %82 = vmatprep.subr.bf16.mxu0 0
    %83 = vmatpush1.bf16.msra.mxu0 0
    %84 = vmatprep.subr.bf16.mxu0 0
    %85 = vmatpush1.bf16.msra.mxu0 0
    %86 = vmatprep.subr.bf16.mxu0 0
    %87 = vmatpush1.bf16.msra.mxu0 %v67
    %88 = vmatprep.subr.bf16.mxu0 0
    %89 = vmatpush1.bf16.msra.mxu0 %v66
    %90 = vmatprep.subr.bf16.mxu0 0
    %91 = vmatpush2.bf16.msra.mxu0 0
    %92 = vmatprep.subr.bf16.mxu0 0
    %93 = vmatpush2.bf16.msra.mxu0 0
    %94 = vmatprep.subr.bf16.mxu0 0
    %95 = vmatpush2.bf16.msra.mxu0 0
    %96 = vmatprep.subr.bf16.mxu0 0
    %97 = vmatpush2.bf16.msra.mxu0 0
    %98 = vmatprep.subr.bf16.mxu0 0
    %99 = vmatpush2.bf16.msra.mxu0 0
    %100 = vmatprep.subr.bf16.mxu0 0
    %101 = vmatpush2.bf16.msra.mxu0 0
    %102 = vmatprep.subr.bf16.mxu0 0
    %103 = vmatpush2.bf16.msra.mxu0 0
    %104 = vmatprep.subr.bf16.mxu0 0
    %105 = vmatpush2.bf16.msra.mxu0 0
    %106 = vmatprep.mubr.bf16.mxu0 0
    %107 = vmatmul.mubr.bf16.gmra.mxu0 %v72
    %v108 = vpop.f32.mrf.mxu0
    %v109 = vadd.f32 %v56, %v108
    %v110 = vpop.f32.mrf.mxu0
    %v111 = vpop.f32.mrf.mxu0
    %v112 = vadd.f32 %v56, %v111
    %v113 = vpop.f32.mrf.mxu0
    %114 = vdwg.mxu0
    %v115 = vmax.f32 %v109, 0.0
    %v116 = vmax.f32 %v112, 0.0
    %117 = vst [vmem:[#allocation7] sm:$0xff] %v115
    %118 = vst [vmem:[#allocation7 + $0x8] sm:$0xff] %v116
    // Predicated region
    $region22: #{fc_forward.1} parent=1 // pred_check
      _
    $region23: #{fc_forward.1} parent=1 // pred_check_branch
      %120 = sbr.rel (0) target = $region25
    $region24: #{fc_forward.1} parent=1 // pred_region
      %s122 = ssub.s32 256, 256
      %123 = vsyncadd [#allocation4], %s122
      %s124 = sshll.u32 [#allocation7], 4
      %s125 = int_to_ptr.vmem [resolvable:$true] %s124
      %130 = dma.vmem_to_hbm [thread:$0]  %s125, 256, %s3, [#allocation4], 128, 128, 8
    $region25: #{fc_forward.1} parent=1 // pred_fallthru
      _
    // Predicated region
    $region26: #{fc_forward.1} parent=1 // pred_check
      _
    $region27: #{fc_forward.1} parent=1 // pred_check_branch
      %132 = sbr.rel (0) target = $region29
    $region28: #{fc_forward.1} parent=1 // pred_region
      %133 = dma.done [#allocation4], 256
    $region29: #{fc_forward.1} parent=1 // pred_fallthru
      _
    %134 = vsyncpa [#allocation3], 1
    %135 = vsyncpa [#allocation6], 1
    %136 = vsyncpa [#allocation4], 1

</llo_original>
